<compile_context>
chip_gen: v5e
topology: v5e:2x2
jax: 0.10.0
libtpu: 0.0.40
codegen_flags: <defaults>
</compile_context>

<pallas_src>
import functools

import jax
import jax.numpy as jnp
from jax.experimental import pallas as pl
from jax.experimental.pallas import tpu as pltpu


def _round_up(x, m):
    return ((x + m - 1) // m) * m


def _grouped_expert_kernel(group_id_ref, tile_valid_ref, x_ref, w_ref, o_ref):
    """Grid = (row_tile i, n_tile j).  Each row tile holds rows of exactly one
    expert (tokens were sorted + padded by expert in the wrapper).

    group_id_ref  : SMEM (num_row_tiles,) int32 -- expert id of row tile i
                    (consumed by the index_maps; unused in the body)
    tile_valid_ref: SMEM (num_row_tiles,) int32 -- 1 iff tile i holds real rows
    x_ref : (TM, d)   tokens of this tile (bf16)
    w_ref : (d, TN)   this tile's expert weight slab (N-tiled, bf16)
    o_ref : (TM, TN)  f32 output tile (written exactly once per grid step)
    """
    i = pl.program_id(0)

    @pl.when(tile_valid_ref[i] != 0)
    def _():
        o_ref[...] = jnp.dot(
            x_ref[...], w_ref[...], preferred_element_type=jnp.float32
        ).astype(o_ref.dtype)

    @pl.when(tile_valid_ref[i] == 0)
    def _():
        # Padding-only tile (from the static upper bound on row tiles): skip the
        # MXU work, write deterministic zeros.  These rows are never gathered back.
        o_ref[...] = jnp.zeros_like(o_ref)


def fmoe_forward(x, gate_w, gate_b, expert_w, expert_b, top_k,
                 *, tm=None, tn=None, compute_dtype=jnp.bfloat16):
    """FMoE.forward for a (B, d_model) token batch.

    x        : (B, d)
    gate_w   : (E, d), gate_b: (E,)          -- NaiveGate linear
    expert_w : (E, d, d_out), expert_b: (E, d_out)  -- one Linear per expert
    """
    B, d = x.shape
    E, d_in, d_out = expert_w.shape
    assert d_in == d
    K = int(top_k)
    BK = B * K

    # ---- Gate (NaiveGate): tiny matmul + top_k + softmax, plain JAX glue -------
    # TODO(synk): top_k/softmax gating kept outside the Pallas kernel (no clean
    # in-kernel top-k primitive); the expert matmul hot path is in the kernel.
    logits = x @ gate_w.T + gate_b                        # (B, E)
    top_val, top_idx = jax.lax.top_k(logits, K)           # (B, K)
    gate_score = jax.nn.softmax(top_val, axis=-1)         # (B, K)

    # ---- Tile sizes ------------------------------------------------------------
    if tm is None:
        tm = 8 if BK < 256 else (128 if BK < 2048 else 256)
    if tn is None:
        tn = d_out if d_out <= 1024 else 512
    assert d_out % tn == 0 and (tn == d_out or tn % 128 == 0)

    # ---- Token -> expert grouping (MOEScatter equivalent, plain JAX) -----------
    expert_flat = top_idx.reshape(-1).astype(jnp.int32)             # (BK,)
    token_flat = jnp.arange(BK, dtype=jnp.int32) // K               # (BK,)

    sort_idx = jnp.argsort(expert_flat)                             # (BK,)
    sorted_expert = expert_flat[sort_idx]
    sorted_token = token_flat[sort_idx]

    counts = jnp.sum(
        expert_flat[None, :] == jnp.arange(E, dtype=jnp.int32)[:, None],
        axis=1).astype(jnp.int32)                                   # (E,)
    tiles_per_expert = (counts + tm - 1) // tm                      # (E,)
    padded_counts = tiles_per_expert * tm
    start = jnp.cumsum(counts) - counts                             # excl. cumsum
    pad_start = jnp.cumsum(padded_counts) - padded_counts

    # Padded destination row of every sorted (token, k) slot.
    dest_sorted = pad_start[sorted_expert] + (
        jnp.arange(BK, dtype=jnp.int32) - start[sorted_expert])     # (BK,)

    # Static upper bound on padded rows / row tiles.
    P = _round_up(BK + E * (tm - 1), tm)
    num_row_tiles = P // tm

    # Gather-source (original token) per padded row; padding rows stay zero.
    src = jnp.zeros((P,), jnp.int32).at[dest_sorted].set(sorted_token)
    valid_row = jnp.zeros((P,), jnp.bool_).at[dest_sorted].set(True)
    x_pad = jnp.where(valid_row[:, None],
                      x.astype(compute_dtype)[src],
                      jnp.zeros((), compute_dtype))                 # (P, d)

    # Per-row-tile expert id + validity (scalar-prefetched into SMEM).
    tile_cum = jnp.cumsum(tiles_per_expert)                         # (E,)
    num_real_tiles = tile_cum[-1]
    t = jnp.arange(num_row_tiles, dtype=jnp.int32)
    gid_raw = jnp.sum(tile_cum[None, :] <= t[:, None], axis=1).astype(jnp.int32)
    last_gid = gid_raw[jnp.maximum(num_real_tiles - 1, 0)]
    tile_valid_b = t < num_real_tiles
    # Empty trailing tiles reuse the previous tile's expert so their weight slab
    # is not re-DMA'd; their compute is skipped inside the kernel.
    group_id = jnp.where(tile_valid_b, gid_raw, last_gid).astype(jnp.int32)
    tile_valid = tile_valid_b.astype(jnp.int32)

    # ---- Grouped expert matmul (Pallas) ----------------------------------------
    w_c = expert_w.astype(compute_dtype)                            # (E, d, d_out)

    # TODO(synk): for very large d_model also tile the contraction dim (k axis);
    # here the full d fits comfortably in one VMEM block.
    itemsize = jnp.dtype(compute_dtype).itemsize
    vmem_need = 2 * (tm * d + d * tn) * itemsize + 2 * tm * tn * 4  # double-buffered
    vmem_limit = int(min(64 * 2**20, max(32 * 2**20, 3 * vmem_need)))

    y_pad = pl.pallas_call(
        _grouped_expert_kernel,
        out_shape=jax.ShapeDtypeStruct((P, d_out), jnp.float32),
        grid_spec=pltpu.PrefetchScalarGridSpec(
            num_scalar_prefetch=2,
            grid=(num_row_tiles, d_out // tn),
            in_specs=[
                pl.BlockSpec((tm, d), lambda i, j, gid, tv: (i, 0)),          # tokens
                pl.BlockSpec((None, d, tn), lambda i, j, gid, tv: (gid[i], 0, j)),  # W_e slab
            ],
            out_specs=pl.BlockSpec((tm, tn), lambda i, j, gid, tv: (i, j)),
        ),
        compiler_params=pltpu.CompilerParams(
            dimension_semantics=("parallel", "parallel"),
            vmem_limit_bytes=vmem_limit,
        ),
    )(group_id, tile_valid, x_pad, w_c)

    # ---- Gather back + bias + gate-score combine (MOEGather + bmm) -------------
    dest_flat = jnp.zeros((BK,), jnp.int32).at[sort_idx].set(dest_sorted)
    y_slots = y_pad[dest_flat].reshape(B, K, d_out)                 # (B, K, d_out)
    y_slots = y_slots + expert_b[top_idx].astype(y_slots.dtype)     # bias, hoisted
    out = jnp.einsum('bk,bkd->bd', gate_score.astype(jnp.float32), y_slots)
    return out.astype(x.dtype)


def fmoe_reference(x, gate_w, gate_b, expert_w, expert_b, top_k,
                   compute_dtype=jnp.float32):
    """Pure-JAX reference mirroring the PyTorch FMoE forward."""
    logits = x @ gate_w.T + gate_b
    top_val, top_idx = jax.lax.top_k(logits, top_k)
    gate_score = jax.nn.softmax(top_val, axis=-1)                   # (B, K)
    xc = x.astype(compute_dtype)
    wc = expert_w.astype(compute_dtype)
    y_all = jnp.einsum('bd,edf->ebf', xc, wc,
                       preferred_element_type=jnp.float32) + expert_b[:, None, :]
    sel = jnp.take_along_axis(
        jnp.transpose(y_all, (1, 0, 2)), top_idx[..., None], axis=1)  # (B, K, d)
    # torch.bmm(gate_score.view(-1,1,K), sel).reshape(-1, d)
    return jnp.einsum('bk,bkd->bd', gate_score, sel).astype(x.dtype)


if __name__ == "__main__":
    # Small, deterministic config (module defaults scaled down).
    B = 16           # batch of tokens
    D_MODEL = 128    # d_model
    NUM_EXPERT = 4
    TOP_K = 2

    key = jax.random.PRNGKey(0)
    kx, kgw, kgb, kew, keb = jax.random.split(key, 5)

    x = jax.random.normal(kx, (B, D_MODEL), dtype=jnp.float32)
    gate_w = jax.random.normal(kgw, (NUM_EXPERT, D_MODEL), dtype=jnp.float32) * 0.05
    gate_b = jax.random.normal(kgb, (NUM_EXPERT,), dtype=jnp.float32) * 0.05
    expert_w = jax.random.normal(kew, (NUM_EXPERT, D_MODEL, D_MODEL), dtype=jnp.float32) * 0.05
    expert_b = jax.random.normal(keb, (NUM_EXPERT, D_MODEL), dtype=jnp.float32) * 0.05

    fwd = jax.jit(functools.partial(fmoe_forward, top_k=TOP_K))
    out = jax.block_until_ready(fwd(x, gate_w, gate_b, expert_w, expert_b))

    # Matched-precision reference (bf16 weights/activations, f32 accumulation).
    ref_bf16 = fmoe_reference(x, gate_w, gate_b, expert_w, expert_b, TOP_K,
                              compute_dtype=jnp.bfloat16)
    # Full-f32 reference (loose tolerance: expected bf16 quantization error).
    ref_f32 = fmoe_reference(x, gate_w, gate_b, expert_w, expert_b, TOP_K,
                             compute_dtype=jnp.float32)

    assert out.shape == (B, D_MODEL)
    assert jnp.allclose(out, ref_bf16, atol=1e-2, rtol=1e-2), "mismatch vs bf16 reference"
    assert jnp.allclose(out, ref_f32, atol=5e-2, rtol=5e-2), "mismatch vs f32 reference"

    print("KERNEL_OK")
</pallas_src>

<mosaic_0001>
module attributes {stable_mosaic.version = 11 : i64} {
  func.func @_grouped_expert_kernel(%arg0: i32, %arg1: i32, %arg2: memref<8xi32, #tpu.memory_space<smem>>, %arg3: memref<8xi32, #tpu.memory_space<smem>>, %arg4: memref<8x128xbf16, #tpu.memory_space<vmem>>, %arg5: memref<1x128x128xbf16, #tpu.memory_space<vmem>>, %arg6: memref<8x128xf32, #tpu.memory_space<vmem>>) attributes {dimension_semantics = [#tpu.dimension_semantics<parallel>, #tpu.dimension_semantics<parallel>], iteration_bounds = array<i64: 8, 1>, scalar_prefetch = 2 : i64, scratch_operands = 0 : i64, tpu.core_type = #tpu.core_type<tc>, window_params = [{transform_indices = @transform_0, window_bounds = array<i64: 8, 128>}, {transform_indices = @transform_1, window_bounds = array<i64: 1, 128, 128>}, {transform_indices = @transform_2, window_bounds = array<i64: 8, 128>}]} {
    %0 = arith.index_cast %arg0 : i32 to index
    %1 = memref.load %arg3[%0] : memref<8xi32, #tpu.memory_space<smem>>
    %c0_i32 = arith.constant 0 : i32
    %2 = arith.cmpi ne, %1, %c0_i32 : i32
    %3 = arith.extui %2 : i1 to i32
    %c0_i32_0 = arith.constant 0 : i32
    %4 = arith.cmpi ne, %3, %c0_i32_0 : i32
    scf.if %4 {
      %c0 = arith.constant 0 : index
      %c0_3 = arith.constant 0 : index
      %10 = vector.load %arg4[%c0, %c0_3] : memref<8x128xbf16, #tpu.memory_space<vmem>>, vector<8x128xbf16>
      %c0_4 = arith.constant 0 : index
      %c0_5 = arith.constant 0 : index
      %c0_6 = arith.constant 0 : index
      %11 = vector.load %arg5[%c0_4, %c0_5, %c0_6] : memref<1x128x128xbf16, #tpu.memory_space<vmem>>, vector<1x128x128xbf16>
      %12 = vector.shape_cast %11 : vector<1x128x128xbf16> to vector<128x128xbf16>
      %cst = arith.constant dense<0.000000e+00> : vector<8x128xf32>
      %13 = tpu.matmul %10, %12, %cst {dimension_numbers = #tpu.dot_dimension_numbers<[1], [0], [0], [1], [0, 0, 1, 1], [], []>} : vector<8x128xbf16>, vector<128x128xbf16>, vector<8x128xf32> -> vector<8x128xf32>
      %c0_7 = arith.constant 0 : index
      %c0_8 = arith.constant 0 : index
      %14 = vector.load %arg6[%c0_7, %c0_8] : memref<8x128xf32, #tpu.memory_space<vmem>>, vector<8x128xf32>
      tpu.vector_store %arg6[%c0_7, %c0_8], %13 {strides = array<i32>} : memref<8x128xf32, #tpu.memory_space<vmem>>, vector<8x128xf32>,
    } else {
    }
    %5 = arith.index_cast %arg0 : i32 to index
    %6 = memref.load %arg3[%5] : memref<8xi32, #tpu.memory_space<smem>>
    %c0_i32_1 = arith.constant 0 : i32
    %7 = arith.cmpi eq, %6, %c0_i32_1 : i32
    %8 = arith.extui %7 : i1 to i32
    %c0_i32_2 = arith.constant 0 : i32
    %9 = arith.cmpi ne, %8, %c0_i32_2 : i32
    scf.if %9 {
      %cst = arith.constant 0.000000e+00 : f32
      %10 = vector.broadcast %cst : f32 to vector<8x128xf32>
      %c0 = arith.constant 0 : index
      %c0_3 = arith.constant 0 : index
      %11 = vector.load %arg6[%c0, %c0_3] : memref<8x128xf32, #tpu.memory_space<vmem>>, vector<8x128xf32>
      tpu.vector_store %arg6[%c0, %c0_3], %10 {strides = array<i32>} : memref<8x128xf32, #tpu.memory_space<vmem>>, vector<8x128xf32>,
    } else {
    }
    return
  }
  func.func @transform_0(%arg0: i32, %arg1: i32, %arg2: memref<8xi32, #tpu.memory_space<smem>>, %arg3: memref<8xi32, #tpu.memory_space<smem>>) -> (i32, i32) {
    %c0_i32 = arith.constant 0 : i32
    %c0_i32_0 = arith.constant 0 : i32
    return %arg0, %c0_i32 : i32, i32
  }
  func.func @transform_1(%arg0: i32, %arg1: i32, %arg2: memref<8xi32, #tpu.memory_space<smem>>, %arg3: memref<8xi32, #tpu.memory_space<smem>>) -> (i32, i32, i32) {
    %0 = arith.index_cast %arg0 : i32 to index
    %1 = memref.load %arg2[%0] : memref<8xi32, #tpu.memory_space<smem>>
    %c0_i32 = arith.constant 0 : i32
    %c0_i32_0 = arith.constant 0 : i32
    return %1, %c0_i32, %arg1 : i32, i32, i32
  }
  func.func @transform_2(%arg0: i32, %arg1: i32, %arg2: memref<8xi32, #tpu.memory_space<smem>>, %arg3: memref<8xi32, #tpu.memory_space<smem>>) -> (i32, i32) {
    %c0_i32 = arith.constant 0 : i32
    return %arg0, %arg1 : i32, i32
  }
}

</mosaic_0001>

<llo_original>
// kernel: eq.8
$region0: #{eq.8}
  %s0 = inlined_call_operand.vmem [shape: s32[16,2], index: 0, kind: input, shape index: {}]
  %s1 = inlined_call_operand.vmem [shape: s32[32], index: 1, kind: output, shape index: {}]
  $region1: #{eq.8} parent=0
    #allocation0 [shape = 'u8[4096]{0}', space=vmem, size = 0x1000, scoped, tag = 'scoped mem for output reshape']
    %v2 = vld [vmem:[%s0] sm:$0x1]
    %vm3 = vcmask 15360
    %4 = vst.msk [vmem:[#allocation0] sm:$0x1] %vm3, %v2
    %s5 = scalar_lea.vmem %s0, 15
    %v6 = vld [vmem:[%s5] sm:$0x1]
    %7 = vrot.lane.b32.xlu0 %v6, 30
    %v8 = vpop.permute.xlu0 %7
    %vm9 = vcmask 261360
    %10 = vst.msk [vmem:[#allocation0] sm:$0x1] %vm9, %v8
    %s11 = scalar_lea.vmem %s0, 14
    %v12 = vld [vmem:[%s11] sm:$0x1]
    %13 = vrot.lane.b32.xlu0 %v12, 28
    %v14 = vpop.permute.xlu0 %13
    %vm15 = vcmask 244960
    %16 = vst.msk [vmem:[#allocation0] sm:$0x1] %vm15, %v14
    %s17 = scalar_lea.vmem %s0, 13
    %v18 = vld [vmem:[%s17] sm:$0x1]
    %19 = vrot.lane.b32.xlu0 %v18, 26
    %v20 = vpop.permute.xlu0 %19
    %vm21 = vcmask 228560
    %22 = vst.msk [vmem:[#allocation0] sm:$0x1] %vm21, %v20
    %s23 = scalar_lea.vmem %s0, 12
    %v24 = vld [vmem:[%s23] sm:$0x1]
    %25 = vrot.lane.b32.xlu0 %v24, 24
    %v26 = vpop.permute.xlu0 %25
    %vm27 = vcmask 212160
    %28 = vst.msk [vmem:[#allocation0] sm:$0x1] %vm27, %v26
    %s29 = scalar_lea.vmem %s0, 11
    %v30 = vld [vmem:[%s29] sm:$0x1]
    %31 = vrot.lane.b32.xlu0 %v30, 22
    %v32 = vpop.permute.xlu0 %31
    %vm33 = vcmask 195760
    %34 = vst.msk [vmem:[#allocation0] sm:$0x1] %vm33, %v32
    %s35 = scalar_lea.vmem %s0, 10
    %v36 = vld [vmem:[%s35] sm:$0x1]
    %37 = vrot.lane.b32.xlu0 %v36, 20
    %v38 = vpop.permute.xlu0 %37
    %vm39 = vcmask 179360
    %40 = vst.msk [vmem:[#allocation0] sm:$0x1] %vm39, %v38
    %s41 = scalar_lea.vmem %s0, 9
    %v42 = vld [vmem:[%s41] sm:$0x1]
    %43 = vrot.lane.b32.xlu0 %v42, 18
    %v44 = vpop.permute.xlu0 %43
    %vm45 = vcmask 162960
    %46 = vst.msk [vmem:[#allocation0] sm:$0x1] %vm45, %v44
    %s47 = scalar_lea.vmem %s0, 8
    %v48 = vld [vmem:[%s47] sm:$0x1]
    %49 = vrot.lane.b32.xlu0 %v48, 16
    %v50 = vpop.permute.xlu0 %49
    %vm51 = vcmask 146560
    %52 = vst.msk [vmem:[#allocation0] sm:$0x1] %vm51, %v50
    %s53 = scalar_lea.vmem %s0, 7
    %v54 = vld [vmem:[%s53] sm:$0x1]
    %55 = vrot.lane.b32.xlu0 %v54, 14
    %v56 = vpop.permute.xlu0 %55
    %vm57 = vcmask 130160
    %58 = vst.msk [vmem:[#allocation0] sm:$0x1] %vm57, %v56
    %s59 = scalar_lea.vmem %s0, 6
    %v60 = vld [vmem:[%s59] sm:$0x1]
    %61 = vrot.lane.b32.xlu0 %v60, 12
    %v62 = vpop.permute.xlu0 %61
    %vm63 = vcmask 113760
    %64 = vst.msk [vmem:[#allocation0] sm:$0x1] %vm63, %v62
    %s65 = scalar_lea.vmem %s0, 5
    %v66 = vld [vmem:[%s65] sm:$0x1]
    %67 = vrot.lane.b32.xlu0 %v66, 10
    %v68 = vpop.permute.xlu0 %67
    %vm69 = vcmask 97360
    %70 = vst.msk [vmem:[#allocation0] sm:$0x1] %vm69, %v68
    %s71 = scalar_lea.vmem %s0, 4
    %v72 = vld [vmem:[%s71] sm:$0x1]
    %73 = vrot.lane.b32.xlu0 %v72, 8
    %v74 = vpop.permute.xlu0 %73
    %vm75 = vcmask 80960
    %76 = vst.msk [vmem:[#allocation0] sm:$0x1] %vm75, %v74
    %s77 = scalar_lea.vmem %s0, 3
    %v78 = vld [vmem:[%s77] sm:$0x1]
    %79 = vrot.lane.b32.xlu0 %v78, 6
    %v80 = vpop.permute.xlu0 %79
    %vm81 = vcmask 64560
    %82 = vst.msk [vmem:[#allocation0] sm:$0x1] %vm81, %v80
    %s83 = scalar_lea.vmem %s0, 2
    %v84 = vld [vmem:[%s83] sm:$0x1]
    %85 = vrot.lane.b32.xlu0 %v84, 4
    %v86 = vpop.permute.xlu0 %85
    %vm87 = vcmask 48160
    %88 = vst.msk [vmem:[#allocation0] sm:$0x1] %vm87, %v86
    %s89 = scalar_lea.vmem %s0, 1
    %v90 = vld [vmem:[%s89] sm:$0x1]
    %91 = vrot.lane.b32.xlu0 %v90, 2
    %v92 = vpop.permute.xlu0 %91
    %vm93 = vcmask 31760
    %94 = vst.msk [vmem:[#allocation0] sm:$0x1] %vm93, %v92
    %s96 = ssub.s32 2, 1
    %v97 = vld [vmem:[#allocation0] sm:%s96]
    %s99 = ssub.s32 2, 1
    %100 = vst [vmem:[%s1] sm:%s99] %v97

// kernel: fmoe_forward.1
$region0: #{fmoe_forward.1}
  #allocation0 [shape = 'u32[]', space=smem, size = 0x4, offset = 0x4, fixed_abs, tag = 'smem constant byte address 0x4 - core index']
  #allocation1 [shape = 'u32[72,128]{1,0:T(1,128)}', space=vmem, size = 0x9000, scoped, tag = 'internal scratch']
  #allocation2 [shape = 's32[1]{0}', space=sflag, size = 0x4, scoped, tag = 'scoped memory for fmoe_forward.1']
  #allocation3 [shape = 'u8[512]{0}', space=smem, size = 0x200, scoped, tag = 'prefetched SMEM operand 0']
  #allocation4 [shape = 'u8[512]{0}', space=smem, size = 0x200, scoped, tag = 'prefetched SMEM operand 1']
  %s0 = inlined_call_operand.vmem [shape: s32[8], index: 0, kind: input, shape index: {}]
  %s1 = inlined_call_operand.vmem [shape: s32[8], index: 1, kind: input, shape index: {}]
  %s2 = inlined_call_operand.vmem [shape: bf16[64,128], index: 2, kind: input, shape index: {}]
  %s3 = inlined_call_operand.vmem [shape: bf16[4,128,128], index: 3, kind: input, shape index: {}]
  %s4 = inlined_call_operand.vmem [shape: f32[64,128], index: 4, kind: output, shape index: {}]
  %s5 = sld [smem:[#allocation0]]
  $region49: #{fmoe_forward.1} parent=0
    _
  %s7 = ssub.s32 1, %s5
  %s8 = scalar_select 0, %s7, %s5
  %s10 = sshll.u32 %s0, 4
  %s11 = int_to_ptr.vmem [resolvable:$true] %s10
  %13 = dma.vmem_to_smem %s11, 16, [#allocation3], [#allocation2]
  %s15 = sshll.u32 %s1, 4
  %s16 = int_to_ptr.vmem [resolvable:$true] %s15
  %18 = dma.vmem_to_smem %s16, 16, [#allocation4], [#allocation2]
  %20 = dma.done [#allocation2], 32
  %21 = sfence
  loop: start=0, step=1, limit=10
  $region2: #{fmoe_forward.1} parent=0 // loop_pre_header
    _
  $region3: #{fmoe_forward.1} parent=0 // loop_header
    %s23 = sphi 0, %s27
    %p24 = scmp.ge.s32.totalorder %s23, 10
    %s30 = sphi 0, %s42
    %s31 = sphi 0, %s38
    %s32 = sphi 0, %s30
    %s33 = sphi 0, %s31
    %s34 = sphi 0, %s32
    %s35 = sphi 0, %s33
    %s45 = sphi 0, %s47
    %s48 = sphi 0, %s45
    %s49 = sphi 0, %s48
    %s65 = sphi 0, %s49
    %s75 = sphi 0, %s77
    %s78 = sphi 0, %s75
    %s79 = sphi 0, %s78
    %s95 = sphi 0, %s79
    %s103 = sphi 0, %s105
    %s106 = sphi 0, %s103
    %s107 = sphi 0, %s106
    %s123 = sphi 0, %s107
  $region4: #{fmoe_forward.1} parent=0 // loop_header_branch
    %26 = sbr.rel (%p24) target = $region8
  $region5: #{fmoe_forward.1} parent=0 // loop_body
    %s28 = ssub.s32 %s23, 1
    %s29 = ssub.s32 %s23, 2
    %s36 = sadd.s32 1, %s31
    %p37 = scmp.ge.s32.totalorder %s36, 1
    %s38 = scalar_select %p37, 0, %s36
    %s39 = sadd.s32 1, %s30
    %s40 = scalar_select %p37, %s39, %s30
    %p41 = scmp.ge.s32.totalorder %s40, 8
    %s42 = scalar_select %p41, 0, %s40
    %s43 = ssub.s32 %s30, %s42
    %p44 = scmp.eq.s32.totalorder %s43, 0
    %s46 = sadd.s32 %s45, 1
    %s47 = scalar_select %p44, %s45, %s46
    %p50 = pneg %p44
    %p51 = scmp.eq.s32.totalorder %s23, 7
    %p52 = por %p50, %p51
    %p53 = scmp.ne.s32.totalorder %s45, %s48
    %p54 = scmp.eq.s32.totalorder %s23, 0
    %p55 = por %p53, %p54
    %p56 = scmp.ne.s32.totalorder %s45, %s48
    %p57 = scmp.eq.s32.totalorder %s28, 7
    %p58 = por %p56, %p57
    %p59 = scmp.ne.s32.totalorder %s48, %s49
    %p60 = scmp.eq.s32.totalorder %s28, 0
    %p61 = por %p59, %p60
    %p62 = scmp.ne.s32.totalorder %s48, %s49
    %p63 = scmp.eq.s32.totalorder %s29, 7
    %p64 = por %p62, %p63
    %p66 = scmp.ne.s32.totalorder %s49, %s65
    %p67 = scmp.eq.s32.totalorder %s29, 0
    %p68 = por %p66, %p67
    %s69 = sld [smem:[#allocation3 + %s30]]
    %s70 = sld [smem:[#allocation3 + %s42]]
    %s71 = ssub.s32 %s69, %s70
    %s72 = ssub.s32 %s31, %s38
    %s73 = sor.u32 %s71, %s72
    %p74 = scmp.eq.s32.totalorder %s73, 0
    %s76 = sadd.s32 %s75, 1
    %s77 = scalar_select %p74, %s75, %s76
    %p80 = pneg %p74
    %p81 = scmp.eq.s32.totalorder %s23, 7
    %p82 = por %p80, %p81
    %p83 = scmp.ne.s32.totalorder %s75, %s78
    %p84 = scmp.eq.s32.totalorder %s23, 0
    %p85 = por %p83, %p84
    %p86 = scmp.ne.s32.totalorder %s75, %s78
    %p87 = scmp.eq.s32.totalorder %s28, 7
    %p88 = por %p86, %p87
    %p89 = scmp.ne.s32.totalorder %s78, %s79
    %p90 = scmp.eq.s32.totalorder %s28, 0
    %p91 = por %p89, %p90
    %p92 = scmp.ne.s32.totalorder %s78, %s79
    %p93 = scmp.eq.s32.totalorder %s29, 7
    %p94 = por %p92, %p93
    %p96 = scmp.ne.s32.totalorder %s79, %s95
    %p97 = scmp.eq.s32.totalorder %s29, 0
    %p98 = por %p96, %p97
    %s99 = ssub.s32 %s30, %s42
    %s100 = ssub.s32 %s31, %s38
    %s101 = sor.u32 %s99, %s100
    %p102 = scmp.eq.s32.totalorder %s101, 0
    %s104 = sadd.s32 %s103, 1
    %s105 = scalar_select %p102, %s103, %s104
    %p108 = pneg %p102
    %p109 = scmp.eq.s32.totalorder %s23, 7
    %p110 = por %p108, %p109
    %p111 = scmp.ne.s32.totalorder %s103, %s106
    %p112 = scmp.eq.s32.totalorder %s23, 0
    %p113 = por %p111, %p112
    %p114 = scmp.ne.s32.totalorder %s103, %s106
    %p115 = scmp.eq.s32.totalorder %s28, 7
    %p116 = por %p114, %p115
    %p117 = scmp.ne.s32.totalorder %s106, %s107
    %p118 = scmp.eq.s32.totalorder %s28, 0
    %p119 = por %p117, %p118
    %p120 = scmp.ne.s32.totalorder %s106, %s107
    %p121 = scmp.eq.s32.totalorder %s29, 7
    %p122 = por %p120, %p121
    %p124 = scmp.ne.s32.totalorder %s107, %s123
    %p125 = scmp.eq.s32.totalorder %s29, 0
    %p126 = por %p124, %p125
    %p127 = scmp.le.s32.totalorder 1, %s23
    %p128 = scmp.lt.s32.totalorder %s23, 9
    %p129 = pnand %p127, %p128
    %p130 = pneg %p129
    // Predicated region
    $region9: #{fmoe_forward.1} parent=5 // pred_check
      _
    $region10: #{fmoe_forward.1} parent=5 // pred_check_branch
      %132 = sbr.rel (%p129) target = $region12
    $region11: #{fmoe_forward.1} parent=5 // pred_region
      %s133 = ssub.s32 %s23, 1
    $region12: #{fmoe_forward.1} parent=5 // pred_fallthru
      _
    %p134 = scmp.lt.s32.totalorder %s23, 8
    // Predicated region
    $region13: #{fmoe_forward.1} parent=5 // pred_check
      %p135 = pneg %p134
    $region14: #{fmoe_forward.1} parent=5 // pred_check_branch
      %137 = sbr.rel (%p135) target = $region16
    $region15: #{fmoe_forward.1} parent=5 // pred_region
      // Predicated region
      $region17: #{fmoe_forward.1} parent=15 // pred_check
        %p138 = pneg %p55
      $region18: #{fmoe_forward.1} parent=15 // pred_check_branch
        %140 = sbr.rel (%p138) target = $region20
      $region19: #{fmoe_forward.1} parent=15 // pred_region
        %p141 = scmp.lt.s32.totalorder %s30, 7
        %s142 = scalar_select %p141, %s30, 7
        %s143 = smul.addr %s142, 4
        %s144 = scalar_lea.vmem %s2, %s143
      $region20: #{fmoe_forward.1} parent=15 // pred_fallthru
        _
      // Predicated region
      $region21: #{fmoe_forward.1} parent=15 // pred_check
        %p145 = pneg %p85
      $region22: #{fmoe_forward.1} parent=15 // pred_check_branch
        %147 = sbr.rel (%p145) target = $region24
      $region23: #{fmoe_forward.1} parent=15 // pred_region
        %s148 = sld [smem:[#allocation3 + %s30]]
        %p149 = scmp.lt.s32.totalorder %s148, 3
        %s150 = scalar_select %p149, %s148, 3
        %p151 = scmp.lt.s32.totalorder %s31, 0
        %s152 = scalar_select %p151, %s31, 0
        %s153 = smul.addr %s150, 16
        %s154 = sadd.s32 %s152, %s153
        %s155 = smul.addr %s154, 4
        %s156 = scalar_lea.vmem %s3, %s155
        %s157 = sld [smem:[#allocation3 + %s30]]
      $region24: #{fmoe_forward.1} parent=15 // pred_fallthru
        _
    $region16: #{fmoe_forward.1} parent=5 // pred_fallthru
      _
    %p158 = scmp.le.s32.totalorder 1, %s23
    %p159 = scmp.lt.s32.totalorder %s23, 9
    %p160 = pnand %p158, %p159
    %p161 = pneg %p160
    // Predicated region
    $region25: #{fmoe_forward.1} parent=5 // pred_check
      _
    $region26: #{fmoe_forward.1} parent=5 // pred_check_branch
      %163 = sbr.rel (%p160) target = $region28
    $region27: #{fmoe_forward.1} parent=5 // pred_region
      %s164 = ssub.s32 %s23, 1
      %p165 = scmp.lt.s32.totalorder %s32, 7
      %s166 = scalar_select %p165, %s32, 7
      %s167 = smul.addr %s166, 4
      %s168 = scalar_lea.vmem %s2, %s167
      %p169 = pneg %p61
      %p170 = pneg %p58
      %s171 = sld [smem:[#allocation3 + %s32]]
      %p172 = scmp.lt.s32.totalorder %s171, 3
      %s173 = scalar_select %p172, %s171, 3
      %p174 = scmp.lt.s32.totalorder %s33, 0
      %s175 = scalar_select %p174, %s33, 0
      %s176 = smul.addr %s173, 16
      %s177 = sadd.s32 %s175, %s176
      %s178 = smul.addr %s177, 4
      %s179 = scalar_lea.vmem %s3, %s178
      %p180 = pneg %p91
      %p181 = pneg %p88
      %p182 = pneg %p119
      %p183 = pneg %p116
      %p184 = scmp.lt.s32.totalorder %s32, 7
      %s185 = scalar_select %p184, %s32, 7
      %p186 = scmp.lt.s32.totalorder %s33, 0
      %s187 = scalar_select %p186, %s33, 0
      %s188 = sadd.s32 %s187, %s185
      %s189 = smul.addr %s188, 8
      %s190 = scalar_lea.vmem %s4, %s189
      %p191 = scmp.lt.s32.totalorder %s32, 7
      %s192 = scalar_select %p191, %s32, 7
      %s193 = smul.addr %s192, 4
      %s194 = scalar_lea.vmem %s2, %s193
      %s195 = sld [smem:[#allocation3 + %s32]]
      %p196 = scmp.lt.s32.totalorder %s195, 3
      %s197 = scalar_select %p196, %s195, 3
      %p198 = scmp.lt.s32.totalorder %s33, 0
      %s199 = scalar_select %p198, %s33, 0
      %s200 = smul.addr %s197, 16
      %s201 = sadd.s32 %s199, %s200
      %s202 = smul.addr %s201, 4
      %s203 = scalar_lea.vmem %s3, %s202
      %s204 = sld [smem:[#allocation3 + %s32]]
      %p205 = scmp.lt.s32.totalorder %s32, 7
      %s206 = scalar_select %p205, %s32, 7
      %p207 = scmp.lt.s32.totalorder %s33, 0
      %s208 = scalar_select %p207, %s33, 0
      %s209 = sadd.s32 %s208, %s206
      %s210 = smul.addr %s209, 8
      %s211 = scalar_lea.vmem %s4, %s210
      %s212 = sld [smem:[#allocation4 + %s32]]
      %p213 = scmp.ne.s32.totalorder %s212, 0
      // Predicated region
      $region29: #{fmoe_forward.1} parent=27 // pred_check
        %p214 = pneg %p213
      $region30: #{fmoe_forward.1} parent=27 // pred_check_branch
        %216 = sbr.rel (%p214) target = $region32
      $region31: #{fmoe_forward.1} parent=27 // pred_region
        %v217 = vld [vmem:[%s194] sm:$0xf]
        %v218 = vld [vmem:[%s203] sm:$0xf]
        %v219 = vld [vmem:[%s203 + $0x4] sm:$0xf]
        %v220 = vld [vmem:[%s203 + $0x8] sm:$0xf]
        %v221 = vld [vmem:[%s203 + $0xc] sm:$0xf]
        %v222 = vld [vmem:[%s203 + $0x10] sm:$0xf]
        %v223 = vld [vmem:[%s203 + $0x14] sm:$0xf]
        %v224 = vld [vmem:[%s203 + $0x18] sm:$0xf]
        %v225 = vld [vmem:[%s203 + $0x1c] sm:$0xf]
        %v226 = vld [vmem:[%s203 + $0x20] sm:$0xf]
        %v227 = vld [vmem:[%s203 + $0x24] sm:$0xf]
        %v228 = vld [vmem:[%s203 + $0x28] sm:$0xf]
        %v229 = vld [vmem:[%s203 + $0x2c] sm:$0xf]
        %v230 = vld [vmem:[%s203 + $0x30] sm:$0xf]
        %v231 = vld [vmem:[%s203 + $0x34] sm:$0xf]
        %v232 = vld [vmem:[%s203 + $0x38] sm:$0xf]
        %v233 = vld [vmem:[%s203 + $0x3c] sm:$0xf]
        %v250 = vunpack.c.l.b16 %v218
        %v251 = vunpack.c.l.b16 %v219
        %v252 = vunpack.c.l.b16 %v220
        %v253 = vunpack.c.l.b16 %v221
        %v254 = vunpack.c.l.b16 %v222
        %v255 = vunpack.c.l.b16 %v223
        %v256 = vunpack.c.l.b16 %v224
        %v257 = vunpack.c.l.b16 %v225
        %v258 = vunpack.c.l.b16 %v226
        %v259 = vunpack.c.l.b16 %v227
        %v260 = vunpack.c.l.b16 %v228
        %v261 = vunpack.c.l.b16 %v229
        %v262 = vunpack.c.l.b16 %v230
        %v263 = vunpack.c.l.b16 %v231
        %v264 = vunpack.c.l.b16 %v232
        %v265 = vunpack.c.l.b16 %v233
        %v266 = vpack.c.b16 %v251, %v250
        %v267 = vpack.c.b16 %v253, %v252
        %v268 = vpack.c.b16 %v255, %v254
        %v269 = vpack.c.b16 %v257, %v256
        %v270 = vpack.c.b16 %v259, %v258
        %v271 = vpack.c.b16 %v261, %v260
        %v272 = vpack.c.b16 %v263, %v262
        %v273 = vpack.c.b16 %v265, %v264
        %282 = vmatpush.bf16.msra.mxu0 %v273
        %283 = vmatpush.bf16.msra.mxu0 %v272
        %284 = vmatpush.bf16.msra.mxu0 %v271
        %285 = vmatpush.bf16.msra.mxu0 %v270
        %286 = vmatpush.bf16.msra.mxu0 %v269
        %287 = vmatpush.bf16.msra.mxu0 %v268
        %288 = vmatpush.bf16.msra.mxu0 %v267
        %289 = vmatpush.bf16.msra.mxu0 %v266
        %290 = vmatmul.bf16.gmra.mxu0 %v217
        %v291 = vpop.f32.mrf.mxu0
        %v292 = vadd.f32 0.0, %v291
        %v293 = vpop.f32.mrf.mxu0
        %294 = vdwg.mxu0
        %295 = vst [vmem:[%s211] sm:$0xff] %v292
      $region32: #{fmoe_forward.1} parent=27 // pred_fallthru
        _
      %s296 = sld [smem:[#allocation4 + %s32]]
      %p297 = scmp.eq.s32.totalorder %s296, 0
      // Predicated region
      $region33: #{fmoe_forward.1} parent=27 // pred_check
        %p298 = pneg %p297
      $region34: #{fmoe_forward.1} parent=27 // pred_check_branch
        %300 = sbr.rel (%p298) target = $region36
      $region35: #{fmoe_forward.1} parent=27 // pred_region
        %301 = vst [vmem:[%s211] sm:$0xff] 0.0
      $region36: #{fmoe_forward.1} parent=27 // pred_fallthru
        _
      %p302 = scmp.lt.s32.totalorder %s32, 7
      %s303 = scalar_select %p302, %s32, 7
      %p304 = scmp.lt.s32.totalorder %s33, 0
      %s305 = scalar_select %p304, %s33, 0
      %s306 = sadd.s32 %s305, %s303
      %s307 = smul.addr %s306, 8
      %s308 = scalar_lea.vmem %s4, %s307
      // Predicated region
      $region37: #{fmoe_forward.1} parent=27 // pred_check
        %p309 = pneg %p116
      $region38: #{fmoe_forward.1} parent=27 // pred_check_branch
        %311 = sbr.rel (%p309) target = $region40
      $region39: #{fmoe_forward.1} parent=27 // pred_region
        _
      $region40: #{fmoe_forward.1} parent=27 // pred_fallthru
        _
    $region28: #{fmoe_forward.1} parent=5 // pred_fallthru
      _
    %p312 = scmp.le.s32.totalorder 2, %s23
    // Predicated region
    $region41: #{fmoe_forward.1} parent=5 // pred_check
      %p313 = pneg %p312
    $region42: #{fmoe_forward.1} parent=5 // pred_check_branch
      %315 = sbr.rel (%p313) target = $region44
    $region43: #{fmoe_forward.1} parent=5 // pred_region
      %s316 = ssub.s32 %s23, 2
      // Predicated region
      $region45: #{fmoe_forward.1} parent=43 // pred_check
        %p317 = pneg %p122
      $region46: #{fmoe_forward.1} parent=43 // pred_check_branch
        %319 = sbr.rel (%p317) target = $region48
      $region47: #{fmoe_forward.1} parent=43 // pred_region
        %p320 = scmp.lt.s32.totalorder %s34, 7
        %s321 = scalar_select %p320, %s34, 7
        %p322 = scmp.lt.s32.totalorder %s35, 0
        %s323 = scalar_select %p322, %s35, 0
        %s324 = sadd.s32 %s323, %s321
        %s325 = smul.addr %s324, 8
        %s326 = scalar_lea.vmem %s4, %s325
      $region48: #{fmoe_forward.1} parent=43 // pred_fallthru
        _
    $region44: #{fmoe_forward.1} parent=5 // pred_fallthru
      _
  $region6: #{fmoe_forward.1} parent=0 // loop_footer
    %s27 = sadd.s32 1, %s23
  $region7: #{fmoe_forward.1} parent=0 // loop_footer_branch
    %22 = sbr.rel target = $region3
  $region8: #{fmoe_forward.1} parent=0 // loop_exit
    _

</llo_original>
